<compile_context>
chip_gen: v7x
topology: tpu7x:2x2x1
jax: 0.10.0
libtpu: 0.0.40
codegen_flags: <defaults>
</compile_context>

<pallas_src>
import functools

import jax
import jax.numpy as jnp
from jax.experimental import pallas as pl
from jax.experimental.pallas import tpu as pltpu

_SUBLANES = 8
_LANES = 128


def _vmem_capacity_bytes():
    """Generation-aware VMEM capacity (128 MiB v5e/v6e, 64 MiB v7x)."""
    try:
        cap = int(pltpu.get_tpu_info().vmem_capacity_bytes)
        if cap > 0:
            return cap
    except Exception:
        pass
    return 64 * 1024 * 1024          # conservative fallback, valid everywhere


def _ce_ls_partial_kernel(logits_ref, target_ref, out_ref, *,
                          epsilon: float, num_classes: int,
                          batch_size: int, tile_rows: int):
    """Per-batch-tile partial sum of the label-smoothed CE loss (fused closed form)."""
    i = pl.program_id(0)
    x = logits_ref[...]                               # (TB, C), native dtype (f32/bf16)
    t = target_ref[...]                               # (TB, 1) int32
    tb, c = x.shape

    # Validity mask for padded rows of the final (partial) tile.  All reductions
    # below are strictly per-row, so garbage in padded rows stays confined.
    row = jax.lax.broadcasted_iota(jnp.int32, (tb, 1), 0) + i * tile_rows
    valid = row < batch_size                          # (TB, 1)

    col = jax.lax.broadcasted_iota(jnp.int32, (tb, c), 1)
    is_t = col == t                                   # inline one-hot mask

    # Reductions over the native-dtype tile, accumulated in f32.
    m = jnp.max(x, axis=1, keepdims=True).astype(jnp.float32)                 # (TB, 1)
    sum_x = jnp.sum(x.astype(jnp.float32), axis=1, keepdims=True)             # (TB, 1)
    x_t = jnp.sum(jnp.where(is_t, x, jnp.zeros_like(x)).astype(jnp.float32),
                  axis=1, keepdims=True)                                      # (TB, 1)
    sum_exp = jnp.sum(jnp.exp(x.astype(jnp.float32) - m),
                      axis=1, keepdims=True)                                  # (TB, 1)
    lse = jnp.log(sum_exp)

    # loss = lse(z) - (1-eps)*z_t - (eps/C)*sum_z  with  z = x - m
    #      = lse + m - (1-eps)*x_t - (eps/C)*sum_x
    row_loss = lse + m - (1.0 - epsilon) * x_t - (epsilon / num_classes) * sum_x
    row_loss = jnp.where(valid, row_loss, 0.0)        # select: NaN/inf of padded rows dropped

    partial = jnp.sum(row_loss)                       # scalar partial for this tile
    # Lane-dense, unmasked store: partial at [0, 0], zeros elsewhere, so the
    # wrapper can do one contiguous jnp.sum over all partial blocks.
    r = jax.lax.broadcasted_iota(jnp.int32, out_ref.shape, 0)
    l = jax.lax.broadcasted_iota(jnp.int32, out_ref.shape, 1)
    out_ref[...] = jnp.where((r == 0) & (l == 0), partial, 0.0).astype(jnp.float32)


def _ce_ls_elementwise_kernel(logits_ref, target_ref, out_ref, *,
                              epsilon: float, num_classes: int):
    """reduction='none': fused (TB, C) elementwise loss (eps/C + (1-eps)*onehot)*(lse - z)."""
    x = logits_ref[...].astype(jnp.float32)
    t = target_ref[...]
    tb, c = x.shape
    m = jnp.max(x, axis=1, keepdims=True)
    z = x - m
    lse = jnp.log(jnp.sum(jnp.exp(z), axis=1, keepdims=True))
    col = jax.lax.broadcasted_iota(jnp.int32, (tb, c), 1)
    if epsilon > 0.0:
        weight = jnp.where(col == t,
                           (1.0 - epsilon) + epsilon / num_classes,
                           epsilon / num_classes)
    else:
        weight = (col == t).astype(jnp.float32)
    out_ref[...] = (weight * (lse - z)).astype(out_ref.dtype)


def _pick_tile_rows(batch, num_classes, itemsize, tile_rows=None):
    """Byte-driven batch tile: biggest (TB, C) block within the per-generation budget."""
    # Sub-32-bit dtypes pack along sublanes (bf16 -> 16-row native tile).
    sublane = _SUBLANES * max(1, 4 // int(itemsize))

    if tile_rows is not None:
        tr = int(tile_rows)
        if tr >= batch:
            return int(batch)                          # block == full array dim: always legal
        # Round UP to the sublane multiple so the BlockSpec (8,128) rule holds.
        return int(max(sublane, -(-tr // sublane) * sublane))

    cap = _vmem_capacity_bytes()
    budget = max(1 << 20, cap // 8)                    # one logits block (double-buffered + temps fit)
    rows = budget // max(1, num_classes * int(itemsize))
    rows = max(sublane, (rows // sublane) * sublane)   # no artificial row cap

    if batch <= rows:
        # Split into >= 2 tiles when possible so v7x's two TensorCores both get
        # work under dimension_semantics=("parallel",); harmless on v5e/v6e.
        if batch >= 2 * sublane:
            half = -(-batch // 2)
            half = -(-half // sublane) * sublane
            return int(min(half, batch))
        return int(batch)
    return int(rows)


def cross_entropy_label_smooth(logits, target, *, num_classes, epsilon,
                               reduction="mean", tile_rows=None):
    """Pallas implementation of CrossEntropyLabelSmooth.forward."""
    B, C = logits.shape
    assert C == num_classes
    target2d = target.astype(jnp.int32).reshape(B, 1)

    tb = _pick_tile_rows(B, C, jnp.dtype(logits.dtype).itemsize, tile_rows)
    num_tiles = pl.cdiv(B, tb)

    cap = _vmem_capacity_bytes()
    cparams = pltpu.CompilerParams(
        dimension_semantics=("parallel",),             # shards tiles across TCs on v7x
        vmem_limit_bytes=int(cap * 3 // 4),            # 96 MiB on 128-MiB parts, 48 MiB on v7x
    )

    if reduction not in ("avg", "mean", "sum"):
        # PyTorch falls through and returns the full (B, C) elementwise loss.
        kernel = functools.partial(
            _ce_ls_elementwise_kernel,
            epsilon=float(epsilon), num_classes=int(num_classes))
        return pl.pallas_call(
            kernel,
            out_shape=jax.ShapeDtypeStruct((B, C), logits.dtype),
            grid=(num_tiles,),
            in_specs=[pl.BlockSpec((tb, C), lambda i: (i, 0)),
                      pl.BlockSpec((tb, 1), lambda i: (i, 0))],
            out_specs=pl.BlockSpec((tb, C), lambda i: (i, 0)),
            compiler_params=cparams,
        )(logits, target2d)

    kernel = functools.partial(
        _ce_ls_partial_kernel,
        epsilon=float(epsilon), num_classes=int(num_classes),
        batch_size=int(B), tile_rows=int(tb))
    partials = pl.pallas_call(
        kernel,
        out_shape=jax.ShapeDtypeStruct((num_tiles * _SUBLANES, _LANES), jnp.float32),
        grid=(num_tiles,),
        in_specs=[pl.BlockSpec((tb, C), lambda i: (i, 0)),
                  pl.BlockSpec((tb, 1), lambda i: (i, 0))],
        out_specs=pl.BlockSpec((_SUBLANES, _LANES), lambda i: (i, 0)),
        compiler_params=cparams,
    )(logits, target2d)

    total = jnp.sum(partials)                          # contiguous reduce; blocks are zero except [0,0]
    if reduction in ("avg", "mean"):
        return total / B
    return total                                       # 'sum'


def _reference(logits, target, *, num_classes, epsilon, reduction="mean"):
    """Pure-JAX reference mirroring the PyTorch module."""
    x = logits.astype(jnp.float32)
    log_probs = jax.nn.log_softmax(x, axis=1)
    onehot = jax.nn.one_hot(target, num_classes, dtype=jnp.float32)
    if epsilon > 0.0:
        targets = (1.0 - epsilon) * onehot + epsilon / num_classes
    else:
        targets = onehot
    loss = -targets * log_probs
    if reduction in ("avg", "mean"):
        return jnp.mean(jnp.sum(loss, axis=1))
    elif reduction == "sum":
        return jnp.sum(loss)
    return loss


if __name__ == "__main__":
    NUM_CLASSES = 32
    EPSILON = 0.1
    B = 8

    key = jax.random.PRNGKey(0)
    k1, k2, k3, k4, k5, k6 = jax.random.split(key, 6)
    logits = jax.random.normal(k1, (B, NUM_CLASSES), dtype=jnp.float32)
    target = jax.random.randint(k2, (B,), 0, NUM_CLASSES, dtype=jnp.int32)

    # mean reduction (single tile)
    loss = cross_entropy_label_smooth(
        logits, target, num_classes=NUM_CLASSES, epsilon=EPSILON, reduction="mean")
    loss = jax.block_until_ready(loss)
    ref = _reference(logits, target, num_classes=NUM_CLASSES,
                     epsilon=EPSILON, reduction="mean")
    assert jnp.allclose(loss, ref, rtol=1e-5, atol=1e-5), (loss, ref)

    # sum reduction, multi-tile grid with a padded last tile (B % TB != 0)
    B2, C2 = 20, 48
    logits2 = jax.random.normal(k3, (B2, C2), dtype=jnp.float32)
    target2 = jax.random.randint(k4, (B2,), 0, C2, dtype=jnp.int32)
    loss2 = cross_entropy_label_smooth(
        logits2, target2, num_classes=C2, epsilon=EPSILON,
        reduction="sum", tile_rows=8)
    loss2 = jax.block_until_ready(loss2)
    ref2 = _reference(logits2, target2, num_classes=C2,
                      epsilon=EPSILON, reduction="sum")
    assert jnp.allclose(loss2, ref2, rtol=1e-5, atol=1e-4), (loss2, ref2)

    # user tile_rows that is NOT a sublane multiple gets rounded up (validated path).
    loss2b = cross_entropy_label_smooth(
        logits2, target2, num_classes=C2, epsilon=EPSILON,
        reduction="sum", tile_rows=5)
    loss2b = jax.block_until_ready(loss2b)
    assert jnp.allclose(loss2b, ref2, rtol=1e-5, atol=1e-4), (loss2b, ref2)

    # auto-tiling with the >=2-tile split (B3 >= 2*sublane) for v7x dual-TC.
    B3 = 32
    logits3 = jax.random.normal(k5, (B3, NUM_CLASSES), dtype=jnp.float32)
    target3 = jax.random.randint(k6, (B3,), 0, NUM_CLASSES, dtype=jnp.int32)
    loss3m = cross_entropy_label_smooth(
        logits3, target3, num_classes=NUM_CLASSES, epsilon=EPSILON, reduction="mean")
    loss3m = jax.block_until_ready(loss3m)
    ref3m = _reference(logits3, target3, num_classes=NUM_CLASSES,
                       epsilon=EPSILON, reduction="mean")
    assert jnp.allclose(loss3m, ref3m, rtol=1e-5, atol=1e-5), (loss3m, ref3m)

    # 'none' reduction returns the full (B, C) elementwise loss like PyTorch.
    loss_none = cross_entropy_label_smooth(
        logits, target, num_classes=NUM_CLASSES, epsilon=EPSILON, reduction="none")
    loss_none = jax.block_until_ready(loss_none)
    ref_none = _reference(logits, target, num_classes=NUM_CLASSES,
                          epsilon=EPSILON, reduction="none")
    assert loss_none.shape == (B, NUM_CLASSES)
    assert jnp.allclose(loss_none, ref_none, rtol=1e-5, atol=1e-5)

    # bf16 ingest (reductions read bf16, accumulate in f32 inside the kernel).
    logits_bf16 = logits.astype(jnp.bfloat16)
    loss_bf = cross_entropy_label_smooth(
        logits_bf16, target, num_classes=NUM_CLASSES, epsilon=EPSILON, reduction="mean")
    loss_bf = jax.block_until_ready(loss_bf)
    ref_bf = _reference(logits_bf16.astype(jnp.float32), target,
                        num_classes=NUM_CLASSES, epsilon=EPSILON, reduction="mean")
    assert jnp.allclose(loss_bf, ref_bf, rtol=1e-3, atol=1e-3), (loss_bf, ref_bf)

    print("KERNEL_OK")
</pallas_src>

<mosaic_0001>
module attributes {stable_mosaic.version = 11 : i64} {
  func.func @_ce_ls_partial_kernel(%arg0: i32, %arg1: memref<8x32xf32, #tpu.memory_space<vmem>>, %arg2: memref<8x1xi32, #tpu.memory_space<vmem>>, %arg3: memref<8x128xf32, #tpu.memory_space<vmem>>) attributes {dimension_semantics = [#tpu.dimension_semantics<parallel>], iteration_bounds = array<i64: 1>, scalar_prefetch = 0 : i64, scratch_operands = 0 : i64, tpu.core_type = #tpu.core_type<tc>, window_params = [{transform_indices = @transform_0, window_bounds = array<i64: 8, 32>}, {transform_indices = @transform_1, window_bounds = array<i64: 8, 1>}, {transform_indices = @transform_2, window_bounds = array<i64: 8, 128>}]} {
    %c0 = arith.constant 0 : index
    %c0_0 = arith.constant 0 : index
    %0 = vector.load %arg1[%c0, %c0_0] : memref<8x32xf32, #tpu.memory_space<vmem>>, vector<8x32xf32>
    %c0_1 = arith.constant 0 : index
    %c0_2 = arith.constant 0 : index
    %1 = vector.load %arg2[%c0_1, %c0_2] : memref<8x1xi32, #tpu.memory_space<vmem>>, vector<8x1xi32>
    %2 = tpu.iota {dimensions = array<i32: 0>} : vector<8x1xi32>
    %c8_i32 = arith.constant 8 : i32
    %3 = arith.muli %arg0, %c8_i32 : i32
    %4 = vector.broadcast %3 : i32 to vector<8x1xi32>
    %5 = arith.addi %2, %4 : vector<8x1xi32>
    %c8_i32_3 = arith.constant 8 : i32
    %6 = vector.broadcast %c8_i32_3 : i32 to vector<8x1xi32>
    %7 = arith.cmpi slt, %5, %6 : vector<8x1xi32>
    %8 = tpu.iota {dimensions = array<i32: 1>} : vector<8x32xi32>
    %9 = vector.broadcast %1 : vector<8x1xi32> to vector<8x32xi32>
    %10 = arith.cmpi eq, %8, %9 : vector<8x32xi32>
    %cst = arith.constant dense<0xFF800000> : vector<8xf32>
    %11 = vector.multi_reduction <maximumf>, %0, %cst [1] : vector<8x32xf32> to vector<8xf32>
    %12 = vector.shape_cast %11 : vector<8xf32> to vector<8x1xf32>
    %cst_4 = arith.constant dense<0.000000e+00> : vector<8xf32>
    %13 = vector.multi_reduction <add>, %0, %cst_4 [1] : vector<8x32xf32> to vector<8xf32>
    %14 = vector.shape_cast %13 : vector<8xf32> to vector<8x1xf32>
    %cst_5 = arith.constant 0.000000e+00 : f32
    %15 = vector.broadcast %cst_5 : f32 to vector<8x32xf32>
    %16 = arith.select %10, %0, %15 : vector<8x32xi1>, vector<8x32xf32>
    %cst_6 = arith.constant dense<0.000000e+00> : vector<8xf32>
    %17 = vector.multi_reduction <add>, %16, %cst_6 [1] : vector<8x32xf32> to vector<8xf32>
    %18 = vector.shape_cast %17 : vector<8xf32> to vector<8x1xf32>
    %19 = vector.broadcast %12 : vector<8x1xf32> to vector<8x32xf32>
    %20 = arith.subf %0, %19 : vector<8x32xf32>
    %21 = math.exp %20 : vector<8x32xf32>
    %cst_7 = arith.constant dense<0.000000e+00> : vector<8xf32>
    %22 = vector.multi_reduction <add>, %21, %cst_7 [1] : vector<8x32xf32> to vector<8xf32>
    %23 = vector.shape_cast %22 : vector<8xf32> to vector<8x1xf32>
    %24 = math.log %23 : vector<8x1xf32>
    %25 = arith.addf %24, %12 : vector<8x1xf32>
    %cst_8 = arith.constant 0.899999976 : f32
    %26 = vector.broadcast %cst_8 : f32 to vector<8x1xf32>
    %27 = arith.mulf %26, %18 : vector<8x1xf32>
    %28 = arith.subf %25, %27 : vector<8x1xf32>
    %cst_9 = arith.constant 3.125000e-03 : f32
    %29 = vector.broadcast %cst_9 : f32 to vector<8x1xf32>
    %30 = arith.mulf %29, %14 : vector<8x1xf32>
    %31 = arith.subf %28, %30 : vector<8x1xf32>
    %cst_10 = arith.constant 0.000000e+00 : f32
    %32 = vector.broadcast %cst_10 : f32 to vector<8x1xf32>
    %33 = arith.select %7, %31, %32 : vector<8x1xi1>, vector<8x1xf32>
    %34 = vector.shape_cast %33 : vector<8x1xf32> to vector<1x8x1xf32>
    %cst_11 = arith.constant dense<0.000000e+00> : vector<1xf32>
    %35 = vector.multi_reduction <add>, %34, %cst_11 [1, 2] : vector<1x8x1xf32> to vector<1xf32>
    %36 = vector.shape_cast %35 : vector<1xf32> to vector<1x1x1xf32>
    %37 = vector.extract %36[0, 0, 0] : f32 from vector<1x1x1xf32>
    %38 = tpu.iota {dimensions = array<i32: 0>} : vector<8x128xi32>
    %39 = tpu.iota {dimensions = array<i32: 1>} : vector<8x128xi32>
    %c0_i32 = arith.constant 0 : i32
    %40 = vector.broadcast %c0_i32 : i32 to vector<8x128xi32>
    %41 = arith.cmpi eq, %38, %40 : vector<8x128xi32>
    %c0_i32_12 = arith.constant 0 : i32
    %42 = vector.broadcast %c0_i32_12 : i32 to vector<8x128xi32>
    %43 = arith.cmpi eq, %39, %42 : vector<8x128xi32>
    %44 = arith.andi %41, %43 : vector<8x128xi1>
    %cst_13 = arith.constant 0.000000e+00 : f32
    %45 = vector.broadcast %37 : f32 to vector<8x128xf32>
    %46 = vector.broadcast %cst_13 : f32 to vector<8x128xf32>
    %47 = arith.select %44, %45, %46 : vector<8x128xi1>, vector<8x128xf32>
    %c0_14 = arith.constant 0 : index
    %c0_15 = arith.constant 0 : index
    %48 = vector.load %arg3[%c0_14, %c0_15] : memref<8x128xf32, #tpu.memory_space<vmem>>, vector<8x128xf32>
    tpu.vector_store %arg3[%c0_14, %c0_15], %47 {strides = array<i32>} : memref<8x128xf32, #tpu.memory_space<vmem>>, vector<8x128xf32>,
    return
  }
  func.func @transform_0(%arg0: i32) -> (i32, i32) {
    %c0_i32 = arith.constant 0 : i32
    %c0_i32_0 = arith.constant 0 : i32
    return %arg0, %c0_i32 : i32, i32
  }
  func.func @transform_1(%arg0: i32) -> (i32, i32) {
    %c0_i32 = arith.constant 0 : i32
    %c0_i32_0 = arith.constant 0 : i32
    return %arg0, %c0_i32 : i32, i32
  }
  func.func @transform_2(%arg0: i32) -> (i32, i32) {
    %c0_i32 = arith.constant 0 : i32
    %c0_i32_0 = arith.constant 0 : i32
    return %arg0, %c0_i32 : i32, i32
  }
}

</mosaic_0001>

<llo_original>
// kernel: tpu_custom_call.1
$region0: #{tpu_custom_call.1}
  #allocation0 [shape = 'u32[]', space=smem, size = 0x4, offset = 0x4, fixed_abs, tag = 'smem constant byte address 0x4 - core index']
  #allocation1 [shape = 'u32[144,128]{1,0:T(1,128)}', space=vmem, size = 0x12000, scoped, tag = 'internal scratch']
  %s0 = inlined_call_operand.vmem [shape: f32[8,32], index: 0, kind: input, shape index: {}]
  %s1 = inlined_call_operand.vmem [shape: s32[8,1], index: 1, kind: input, shape index: {}]
  %s2 = inlined_call_operand.hbm [shape: f32[8,128], index: 2, kind: output, shape index: {}]
  %s3 = sld [smem:[#allocation0]]
  $region18: #{tpu_custom_call.1} parent=0
    _
  %s5 = ssub.s32 1, %s3
  %s6 = scalar_select 0, %s5, %s3
  $region1: #{tpu_custom_call.1} parent=0
    #allocation2 [shape = 'u8[4096]{0}', space=vmem, size = 0x1000, scoped, tag = 'output window, operand 0, single buffered']
    #allocation3 [shape = 's32[1]{0}', space=sflag, size = 0x4, scoped, tag = 'scoped memory for tpu_custom_call.1']
    %7 = vsyncpa [#allocation3], 0
    // Predicated region
    $region2: #{tpu_custom_call.1} parent=1 // pred_check
      _
    $region3: #{tpu_custom_call.1} parent=1 // pred_check_branch
      %9 = sbr.rel (0) target = $region5
    $region4: #{tpu_custom_call.1} parent=1 // pred_region
      _
    $region5: #{tpu_custom_call.1} parent=1 // pred_fallthru
      _
    // Predicated region
    $region6: #{tpu_custom_call.1} parent=1 // pred_check
      _
    $region7: #{tpu_custom_call.1} parent=1 // pred_check_branch
      %11 = sbr.rel (0) target = $region9
    $region8: #{tpu_custom_call.1} parent=1 // pred_region
      _
    $region9: #{tpu_custom_call.1} parent=1 // pred_fallthru
      _
    %v12 = vld [vmem:[%s0] sm:$0xff]
    %v13 = vld [vmem:[%s1] sm:$0xff]
    %v14 = vlaneseq
    %v15 = vshrl.u32 %v14, 7
    %s16 = smul.u32 0, 8
    %v17 = vstv %s16
    %v18 = vadd.s32 %v15, %v17
    %vm19 = vcmp.lt.s32.totalorder %v18, 8
    %v20 = vlaneseq
    %v21 = vand.u32 %v20, 127
    %22 = vset.pattern.permute.xlu0 0
    %23 = vperm.xlu0 %22, %v13
    %v24 = vpop.permute.xlu0 %23
    %vm25 = vcmp.eq.s32.totalorder %v21, %v24
    %vm26 = vcmask 261120
    %v27 = vsel %vm26, %v12, -inf
    %28 = vmax.xlane.f32.xlu0 %v27
    %v29 = vpop.xlane.xlu0 %28
    %v30 = vsel %vm26, %v12, 0.0
    %31 = vadd.xlane.f32.xlu0 %v30
    %v32 = vpop.xlane.xlu0 %31
    %v33 = vsel %vm25, %v12, 0.0
    %v34 = vsel %vm26, %v33, 0.0
    %35 = vadd.xlane.f32.xlu0 %v34
    %v36 = vpop.xlane.xlu0 %35
    %v37 = vsub.f32 %v12, %v29
    %v38 = vmul.f32 %v37, 1.442695
    %v39 = vpow.pop %v38
    %v40 = vsel %vm26, %v39, 0.0
    %41 = vadd.xlane.f32.xlu0 %v40
    %v42 = vpop.xlane.xlu0 %41
    %v43 = vlog2.pop %v42
    %v44 = vmul.f32 %v43, 0.6931472
    %v45 = vadd.f32 %v44, %v29
    %v46 = vmul.f32 %v36, 0.9
    %v47 = vsub.f32 %v45, %v46
    %v48 = vmul.f32 %v32, 0.003125
    %v49 = vsub.f32 %v47, %v48
    %v50 = vsel %vm19, %v49, 0.0
    %vm51 = vcmask 7168
    %v52 = vsel %vm51, %v50, 0.0
    %53 = vadd.xlane.f32.xlu0 %v52
    %v54 = vpop.xlane.xlu0 %53
    %v55 = vrot.slane %v54, 4
    %v56 = vadd.f32 %v54, %v55
    %v57 = vrot.slane %v56, 2
    %v58 = vadd.f32 %v56, %v57
    %v59 = vrot.slane %v58, 1
    %v60 = vadd.f32 %v58, %v59
    %s61 = vtos %v60
    %vm62 = vcmp.eq.s32.totalorder %v15, 0
    %vm63 = vcmp.eq.s32.totalorder %v21, 0
    %vm64 = vmand %vm62, %vm63
    %v65 = vstv %s61
    %v66 = vsel %vm64, %v65, 0.0
    %67 = vst [vmem:[#allocation2] sm:$0xff] %v66
    // Predicated region
    $region10: #{tpu_custom_call.1} parent=1 // pred_check
      _
    $region11: #{tpu_custom_call.1} parent=1 // pred_check_branch
      %69 = sbr.rel (0) target = $region13
    $region12: #{tpu_custom_call.1} parent=1 // pred_region
      %s71 = ssub.s32 128, 128
      %72 = vsyncadd [#allocation3], %s71
      %s74 = sshll.u32 [#allocation2], 4
      %s75 = int_to_ptr.vmem [resolvable:$true] %s74
      %77 = dma.vmem_to_hbm [thread:$0]  %s75, 128, %s2, [#allocation3]
    $region13: #{tpu_custom_call.1} parent=1 // pred_fallthru
      _
    // Predicated region
    $region14: #{tpu_custom_call.1} parent=1 // pred_check
      _
    $region15: #{tpu_custom_call.1} parent=1 // pred_check_branch
      %79 = sbr.rel (0) target = $region17
    $region16: #{tpu_custom_call.1} parent=1 // pred_region
      %80 = dma.done [#allocation3], 128
    $region17: #{tpu_custom_call.1} parent=1 // pred_fallthru
      _
    %81 = vsyncpa [#allocation3], 1

</llo_original>
